<compile_context>
chip_gen: v5e
topology: v5e:2x2
jax: 0.10.0
libtpu: 0.0.40
codegen_flags: <defaults>
</compile_context>

<pallas_src>
import jax
import jax.numpy as jnp
from jax.experimental import pallas as pl
from jax.experimental.pallas import tpu as pltpu


def _identity_kernel(x_ref, o_ref):
    # Straight VMEM tile copy; all the work is in the DMA pipeline.
    o_ref[...] = x_ref[...]


_LANES = 128
# ~2 MiB per block buffer; with 2-in + 2-out double buffers that is ~8 MiB of
# scoped VMEM, which fits every generation's default (v5e 16 MiB, v6e 32 MiB,
# v7x 64 MiB physical) while being big enough to amortize per-step overhead.
_PER_BUFFER_BYTES = 2 * 1024 * 1024


def identity(x: jax.Array) -> jax.Array:
    """Pallas identity: returns a copy of x with identical shape/dtype."""
    orig_shape = x.shape
    dtype = x.dtype
    n = x.size

    # Degenerate inputs: identity needs no data movement at all.
    if n == 0 or x.ndim == 0:
        return x

    itemsize = jnp.dtype(dtype).itemsize
    # Sub-32-bit dtypes pack along sublanes (bf16 -> 16 rows/vreg, int8 -> 32);
    # keep row tiles a multiple of the packed count for unmasked loads/stores.
    sublane_mult = 8 * max(1, 4 // itemsize)

    # Pick a wide, lane-dense 2-D view of the flat tensor.  Prefer a lane width
    # (multiple of 128, up to 1024) that divides the element count exactly so
    # no pad / slice is required at all.
    flat = x.reshape(-1)
    lane_width = None
    if n % _LANES == 0:
        for k in (8, 4, 2, 1):          # try 1024, 512, 256, 128 lanes
            if n % (_LANES * k) == 0:
                lane_width = _LANES * k
                break
    if lane_width is None:
        # Unaligned element count: small 1-D tail pad (rare fallback path).
        lane_width = _LANES * 8
    rows = pl.cdiv(n, lane_width)
    padded_n = rows * lane_width
    if padded_n != n:
        flat = jnp.pad(flat, (0, padded_n - n))
    x2 = flat.reshape(rows, lane_width)

    # Row tile from a byte budget (not a fixed row count); always a multiple of
    # the packed sublane count, or the full row extent if the array is short.
    rows_per_block = max(
        sublane_mult,
        (_PER_BUFFER_BYTES // (lane_width * itemsize)) // sublane_mult * sublane_mult,
    )
    tile_r = min(rows, rows_per_block)
    # tile_r is either == rows (full extent, always legal) or a multiple of the
    # sublane packing; Pallas masks the partial last block if rows % tile_r != 0.
    grid = (pl.cdiv(rows, tile_r),)

    out = pl.pallas_call(
        _identity_kernel,
        out_shape=jax.ShapeDtypeStruct((rows, lane_width), dtype),
        grid_spec=pltpu.PrefetchScalarGridSpec(
            num_scalar_prefetch=0,
            grid=grid,
            in_specs=[pl.BlockSpec((tile_r, lane_width), lambda i: (i, 0))],
            out_specs=pl.BlockSpec((tile_r, lane_width), lambda i: (i, 0)),
        ),
        compiler_params=pltpu.CompilerParams(
            dimension_semantics=("parallel",),
        ),
        cost_estimate=pl.CostEstimate(
            flops=0, transcendentals=0, bytes_accessed=2 * n * itemsize
        ),
        # TODO(synk): add input_output_aliases={0: 0} when the caller donates x
        # (or skip the kernel entirely at the framework level) -- identity has
        # no compute, so aliasing/eliding the copy is the ultimate win.
    )(x2)

    if padded_n != n:
        out = out.reshape(-1)[:n]
    return out.reshape(orig_shape)


if __name__ == "__main__":
    key = jax.random.PRNGKey(0)
    # Small NCHW input consistent with a conv-style model: (N=2, C=4, H=16, W=16)
    x = jax.random.normal(key, (2, 4, 16, 16), dtype=jnp.float32)

    y = identity(x)
    jax.block_until_ready(y)

    assert y.shape == x.shape and y.dtype == x.dtype
    assert bool(jnp.array_equal(y, x))
    print("KERNEL_OK")
</pallas_src>

<mosaic_0001>
module attributes {stable_mosaic.version = 11 : i64} {
  func.func @_identity_kernel(%arg0: i32, %arg1: memref<2x1024xf32, #tpu.memory_space<vmem>>, %arg2: memref<2x1024xf32, #tpu.memory_space<vmem>>) attributes {dimension_semantics = [#tpu.dimension_semantics<parallel>], iteration_bounds = array<i64: 1>, scalar_prefetch = 0 : i64, scratch_operands = 0 : i64, tpu.core_type = #tpu.core_type<tc>, window_params = [{transform_indices = @transform_0, window_bounds = array<i64: 2, 1024>}, {transform_indices = @transform_1, window_bounds = array<i64: 2, 1024>}]} {
    %c0 = arith.constant 0 : index
    %c0_0 = arith.constant 0 : index
    %0 = vector.load %arg1[%c0, %c0_0] : memref<2x1024xf32, #tpu.memory_space<vmem>>, vector<2x1024xf32>
    %c0_1 = arith.constant 0 : index
    %c0_2 = arith.constant 0 : index
    %1 = vector.load %arg2[%c0_1, %c0_2] : memref<2x1024xf32, #tpu.memory_space<vmem>>, vector<2x1024xf32>
    tpu.vector_store %arg2[%c0_1, %c0_2], %0 {strides = array<i32>} : memref<2x1024xf32, #tpu.memory_space<vmem>>, vector<2x1024xf32>,
    return
  }
  func.func @transform_0(%arg0: i32) -> (i32, i32) {
    %c0_i32 = arith.constant 0 : i32
    %c0_i32_0 = arith.constant 0 : i32
    return %arg0, %c0_i32 : i32, i32
  }
  func.func @transform_1(%arg0: i32) -> (i32, i32) {
    %c0_i32 = arith.constant 0 : i32
    %c0_i32_0 = arith.constant 0 : i32
    return %arg0, %c0_i32 : i32, i32
  }
}

</mosaic_0001>

<llo_original>
// kernel: tpu_custom_call.1
$region0: #{tpu_custom_call.1}
  #allocation0 [shape = 'u32[]', space=smem, size = 0x4, offset = 0x4, fixed_abs, tag = 'smem constant byte address 0x4 - core index']
  #allocation1 [shape = 'u32[72,128]{1,0:T(1,128)}', space=vmem, size = 0x9000, scoped, tag = 'internal scratch']
  %s0 = inlined_call_operand.hbm [shape: f32[2,1024], index: 0, kind: input, shape index: {}]
  %s1 = inlined_call_operand.hbm [shape: f32[2,1024], index: 1, kind: output, shape index: {}]
  %s2 = sld [smem:[#allocation0]]
  $region18: #{tpu_custom_call.1} parent=0
    _
  %s4 = ssub.s32 1, %s2
  %s5 = scalar_select 0, %s4, %s2
  $region1: #{tpu_custom_call.1} parent=0
    #allocation2 [shape = 'u8[8192]{0}', space=vmem, size = 0x2000, scoped, tag = 'input window, operand 0, single buffered']
    #allocation3 [shape = 's32[1]{0}', space=sflag, size = 0x4, scoped, tag = 'scoped memory for tpu_custom_call.1']
    #allocation4 [shape = 's32[1]{0}', space=sflag, size = 0x4, scoped, tag = 'scoped memory for tpu_custom_call.1']
    #allocation5 [shape = 'u8[8192]{0}', space=vmem, size = 0x2000, scoped, tag = 'output window, operand 0, single buffered']
    %6 = vsyncpa [#allocation3], 0
    %7 = vsyncpa [#allocation4], 0
    // Predicated region
    $region2: #{tpu_custom_call.1} parent=1 // pred_check
      _
    $region3: #{tpu_custom_call.1} parent=1 // pred_check_branch
      %9 = sbr.rel (0) target = $region5
    $region4: #{tpu_custom_call.1} parent=1 // pred_region
      %11 = vsyncadd [#allocation3], 0
      %s13 = sshll.u32 %s0, 4
      %s14 = int_to_ptr.hbm [resolvable:$true] %s13
      %s15 = sshll.u32 [#allocation2], 4
      %s16 = int_to_ptr.vmem [resolvable:$true] %s15
      %18 = dma.hbm_to_vmem [thread:$0]  %s14, 256, %s16, [#allocation3]
    $region5: #{tpu_custom_call.1} parent=1 // pred_fallthru
      _
    // Predicated region
    $region6: #{tpu_custom_call.1} parent=1 // pred_check
      _
    $region7: #{tpu_custom_call.1} parent=1 // pred_check_branch
      %20 = sbr.rel (0) target = $region9
    $region8: #{tpu_custom_call.1} parent=1 // pred_region
      %22 = dma.done [#allocation3], 256
    $region9: #{tpu_custom_call.1} parent=1 // pred_fallthru
      _
    %v23 = vld [vmem:[#allocation2] sm:$0xff]
    %v24 = vld [vmem:[#allocation2 + $0x8] sm:$0xff]
    %25 = vst [vmem:[#allocation5] sm:$0xff] %v23
    %26 = vst [vmem:[#allocation5 + $0x8] sm:$0xff] %v24
    // Predicated region
    $region10: #{tpu_custom_call.1} parent=1 // pred_check
      _
    $region11: #{tpu_custom_call.1} parent=1 // pred_check_branch
      %28 = sbr.rel (0) target = $region13
    $region12: #{tpu_custom_call.1} parent=1 // pred_region
      %30 = vsyncadd [#allocation4], 0
      %s32 = sshll.u32 [#allocation5], 4
      %s33 = int_to_ptr.vmem [resolvable:$true] %s32
      %s34 = sshll.u32 %s1, 4
      %s35 = int_to_ptr.hbm [resolvable:$true] %s34
      %37 = dma.vmem_to_hbm [thread:$0]  %s33, 256, %s35, [#allocation4]
    $region13: #{tpu_custom_call.1} parent=1 // pred_fallthru
      _
    // Predicated region
    $region14: #{tpu_custom_call.1} parent=1 // pred_check
      _
    $region15: #{tpu_custom_call.1} parent=1 // pred_check_branch
      %39 = sbr.rel (0) target = $region17
    $region16: #{tpu_custom_call.1} parent=1 // pred_region
      %41 = dma.done [#allocation4], 256
    $region17: #{tpu_custom_call.1} parent=1 // pred_fallthru
      _
    %42 = vsyncpa [#allocation3], 1
    %43 = vsyncpa [#allocation4], 1

</llo_original>
